<compile_context>
chip_gen: v7x
topology: tpu7x:2x2x1
jax: 0.10.0
libtpu: 0.0.40
codegen_flags: <defaults>
</compile_context>

<pallas_src>
import functools

import jax
import jax.numpy as jnp
from jax.experimental import pallas as pl
from jax.experimental.pallas import tpu as pltpu

LANES = 128


def _sublane_multiple(dtype):
    itemsize = jnp.dtype(dtype).itemsize
    if itemsize >= 4:
        return 8
    if itemsize == 2:
        return 16
    return 32


def _chip_defaults():
    """(num_cores, max_row_tile) chosen per TPU generation."""
    kind = ""
    try:
        kind = jax.devices()[0].device_kind.lower()
    except Exception:
        pass
    is_v7 = ("v7" in kind) or ("7x" in kind)
    is_v6 = "v6" in kind
    num_cores = 2 if is_v7 else 1          # only v7x has 2 TCs per chip
    # 8192 rows * 128 lanes * 4B = 4 MiB / input / block (16 MiB double-buffered
    # for 2 f32 inputs) -- fine for v6e/v7x.  v5e / unknown chips: 4096.
    max_row_tile = 8192 if (is_v6 or is_v7) else 4096
    return num_cores, max_row_tile


def _dice_partial_kernel(pr_ref, gt_ref, out_ref, acc_ref, *,
                         steps_per_core, block_rows, valid_rows, mask_rows):
    """Accumulate (8,128)-shaped partial sums of (gt*sigmoid(pr), sigmoid(pr), gt)."""
    i = pl.program_id(1)

    @pl.when(i == 0)
    def _init():
        acc_ref[...] = jnp.zeros_like(acc_ref)

    pr = pr_ref[...].astype(jnp.float32)
    gt = gt_ref[...].astype(jnp.float32)

    # sigmoid(x) == 0.5*tanh(0.5*x) + 0.5 : single EUP transcendental pass.
    sig = 0.5 * jnp.tanh(0.5 * pr) + 0.5

    if mask_rows:
        # Partial / out-of-range edge blocks: zero contributions of rows whose
        # global row index is >= valid_rows (their VMEM contents are garbage).
        row0 = (pl.program_id(0) * steps_per_core + i) * block_rows
        row_idx = row0 + jax.lax.broadcasted_iota(
            jnp.int32, (block_rows, LANES), 0)
        valid = row_idx < valid_rows
        sig = jnp.where(valid, sig, 0.0)
        gt = jnp.where(valid, gt, 0.0)

    # Pure-VPU per-step reduction over the leading axis; the cross-sublane /
    # cross-lane reductions are deferred to the wrapper.
    r = block_rows // 8
    acc_ref[0] += jnp.sum((gt * sig).reshape(r, 8, LANES), axis=0)  # tp partial
    acc_ref[1] += jnp.sum(sig.reshape(r, 8, LANES), axis=0)         # sum(pr)
    acc_ref[2] += jnp.sum(gt.reshape(r, 8, LANES), axis=0)          # sum(gt)

    @pl.when(i == pl.num_programs(1) - 1)
    def _finalize():
        out_ref[...] = acc_ref[...].reshape((1, 3, 8, LANES))


def dice_loss(y_pr, y_gt, *, eps=1e-07, beta=1.0):
    """1 - f_score(y_pr, y_gt, beta, eps, threshold=None, activation='sigmoid')."""
    assert y_pr.shape == y_gt.shape
    n = int(y_pr.size)

    num_cores, max_row_tile = _chip_defaults()

    pr_flat = jnp.ravel(y_pr)
    gt_flat = jnp.ravel(y_gt)

    lane_pad = (-n) % LANES
    if lane_pad:
        # Rare path (segmentation tensors are normally 128-aligned): pad only
        # to the next multiple of 128 so the (rows, 128) reshape is legal.
        # Sentinel -1e9 -> sigmoid == 0 exactly; gt pad == 0.  This is the only
        # case that copies the input streams.
        pr_flat = jnp.pad(pr_flat, (0, lane_pad), constant_values=-1e9)
        gt_flat = jnp.pad(gt_flat, (0, lane_pad))
    rows = (n + lane_pad) // LANES

    pr2 = pr_flat.reshape(rows, LANES)
    gt2 = gt_flat.reshape(rows, LANES)

    # Static tiling math (Python ints only).
    sub_mult = max(_sublane_multiple(pr2.dtype), _sublane_multiple(gt2.dtype))
    rows_per_core = -(-rows // num_cores)
    block_rows = min(max_row_tile, -(-rows_per_core // sub_mult) * sub_mult)
    steps_per_core = -(-rows_per_core // block_rows)
    coverage_rows = num_cores * steps_per_core * block_rows
    mask_rows = coverage_rows != rows                 # partial edge block(s)?
    last_block = -(-rows // block_rows) - 1           # last in-bounds block idx

    if mask_rows:
        # Clamp logical block indices that run past the array; those steps are
        # fully masked out in-kernel so the re-read data contributes nothing.
        def in_map(c, i):
            return (jnp.minimum(c * steps_per_core + i, last_block), 0)
    else:
        def in_map(c, i):
            return (c * steps_per_core + i, 0)

    in_spec = pl.BlockSpec((block_rows, LANES), in_map)

    # 2 pipeline buffers per input stream + headroom for output/scratch.
    vmem_need = 2 * block_rows * LANES * (pr2.dtype.itemsize + gt2.dtype.itemsize)
    vmem_limit = int(vmem_need + (8 << 20))

    kernel = functools.partial(
        _dice_partial_kernel,
        steps_per_core=steps_per_core,
        block_rows=block_rows,
        valid_rows=rows,
        mask_rows=mask_rows,
    )

    partials = pl.pallas_call(
        kernel,
        out_shape=jax.ShapeDtypeStruct((num_cores, 3, 8, LANES), jnp.float32),
        grid_spec=pltpu.PrefetchScalarGridSpec(
            num_scalar_prefetch=0,
            grid=(num_cores, steps_per_core),
            in_specs=[in_spec, in_spec],
            out_specs=pl.BlockSpec((1, 3, 8, LANES), lambda c, i: (c, 0, 0, 0)),
            scratch_shapes=[pltpu.VMEM((3, 8, LANES), jnp.float32)],
        ),
        compiler_params=pltpu.CompilerParams(
            dimension_semantics=("parallel", "arbitrary"),
            vmem_limit_bytes=vmem_limit,
        ),
    )(pr2, gt2)

    # Tiny finalize (cross-sublane/lane reductions + f-score) in the wrapper.
    tp = jnp.sum(partials[:, 0])
    sum_pr = jnp.sum(partials[:, 1])
    sum_gt = jnp.sum(partials[:, 2])
    fp = sum_pr - tp
    fn = sum_gt - tp
    beta2 = beta * beta
    score = ((1.0 + beta2) * tp + eps) / ((1.0 + beta2) * tp + beta2 * fn + fp + eps)
    return 1.0 - score


def _dice_loss_ref(y_pr, y_gt, eps=1e-07, beta=1.0):
    pr = jax.nn.sigmoid(y_pr.astype(jnp.float32))
    gt = y_gt.astype(jnp.float32)
    tp = jnp.sum(gt * pr)
    fp = jnp.sum(pr) - tp
    fn = jnp.sum(gt) - tp
    b2 = beta * beta
    score = ((1 + b2) * tp + eps) / ((1 + b2) * tp + b2 * fn + fp + eps)
    return 1.0 - score


if __name__ == "__main__":
    key = jax.random.PRNGKey(0)
    k1, k2 = jax.random.split(key)
    # NCHW inputs, consistent with the segmentation module's usage.
    y_pr = jax.random.normal(k1, (2, 4, 16, 16), dtype=jnp.float32)            # raw logits
    y_gt = (jax.random.uniform(k2, (2, 4, 16, 16)) > 0.5).astype(jnp.float32)  # binary mask

    loss = dice_loss(y_pr, y_gt)
    jax.block_until_ready(loss)

    ref = _dice_loss_ref(y_pr, y_gt)
    assert jnp.allclose(loss, ref, rtol=1e-4, atol=1e-6), (loss, ref)
    print("KERNEL_OK")
</pallas_src>

<mosaic_0001>
module attributes {stable_mosaic.version = 11 : i64} {
  func.func @_dice_partial_kernel(%arg0: i32, %arg1: i32, %arg2: memref<16x128xf32, #tpu.memory_space<vmem>>, %arg3: memref<16x128xf32, #tpu.memory_space<vmem>>, %arg4: memref<1x3x8x128xf32, #tpu.memory_space<vmem>>, %arg5: memref<3x8x128xf32, #tpu.memory_space<vmem>>) attributes {dimension_semantics = [#tpu.dimension_semantics<parallel>, #tpu.dimension_semantics<arbitrary>], iteration_bounds = array<i64: 1, 1>, scalar_prefetch = 0 : i64, scratch_operands = 1 : i64, tpu.core_type = #tpu.core_type<tc>, window_params = [{transform_indices = @transform_0, window_bounds = array<i64: 16, 128>}, {transform_indices = @transform_1, window_bounds = array<i64: 16, 128>}, {transform_indices = @transform_2, window_bounds = array<i64: 1, 3, 8, 128>}]} {
    %c0_i32 = arith.constant 0 : i32
    %0 = arith.cmpi eq, %arg1, %c0_i32 : i32
    %1 = arith.extui %0 : i1 to i32
    %c0_i32_0 = arith.constant 0 : i32
    %2 = arith.cmpi ne, %1, %c0_i32_0 : i32
    scf.if %2 {
      %cst_27 = arith.constant 0.000000e+00 : f32
      %40 = vector.broadcast %cst_27 : f32 to vector<3x8x128xf32>
      %c0_28 = arith.constant 0 : index
      %c0_29 = arith.constant 0 : index
      %c0_30 = arith.constant 0 : index
      %41 = vector.load %arg5[%c0_28, %c0_29, %c0_30] : memref<3x8x128xf32, #tpu.memory_space<vmem>>, vector<3x8x128xf32>
      tpu.vector_store %arg5[%c0_28, %c0_29, %c0_30], %40 {strides = array<i32>} : memref<3x8x128xf32, #tpu.memory_space<vmem>>, vector<3x8x128xf32>,
    } else {
    }
    %c0 = arith.constant 0 : index
    %c0_1 = arith.constant 0 : index
    %3 = vector.load %arg2[%c0, %c0_1] : memref<16x128xf32, #tpu.memory_space<vmem>>, vector<16x128xf32>
    %c0_2 = arith.constant 0 : index
    %c0_3 = arith.constant 0 : index
    %4 = vector.load %arg3[%c0_2, %c0_3] : memref<16x128xf32, #tpu.memory_space<vmem>>, vector<16x128xf32>
    %cst = arith.constant 5.000000e-01 : f32
    %5 = vector.broadcast %cst : f32 to vector<16x128xf32>
    %6 = arith.mulf %5, %3 : vector<16x128xf32>
    %7 = math.tanh %6 : vector<16x128xf32>
    %cst_4 = arith.constant 5.000000e-01 : f32
    %8 = vector.broadcast %cst_4 : f32 to vector<16x128xf32>
    %9 = arith.mulf %8, %7 : vector<16x128xf32>
    %cst_5 = arith.constant 5.000000e-01 : f32
    %10 = vector.broadcast %cst_5 : f32 to vector<16x128xf32>
    %11 = arith.addf %9, %10 : vector<16x128xf32>
    %c0_6 = arith.constant 0 : index
    %c0_7 = arith.constant 0 : index
    %c0_8 = arith.constant 0 : index
    %12 = vector.load %arg5[%c0_6, %c0_7, %c0_8] : memref<3x8x128xf32, #tpu.memory_space<vmem>>, vector<1x8x128xf32>
    %13 = vector.shape_cast %12 : vector<1x8x128xf32> to vector<8x128xf32>
    %14 = arith.mulf %4, %11 : vector<16x128xf32>
    %15 = vector.shape_cast %14 : vector<16x128xf32> to vector<2x8x128xf32>
    %cst_9 = arith.constant dense<0.000000e+00> : vector<8x128xf32>
    %16 = vector.multi_reduction <add>, %15, %cst_9 [0] : vector<2x8x128xf32> to vector<8x128xf32>
    %17 = arith.addf %13, %16 : vector<8x128xf32>
    %c0_10 = arith.constant 0 : index
    %c0_11 = arith.constant 0 : index
    %c0_12 = arith.constant 0 : index
    %18 = vector.load %arg5[%c0_10, %c0_11, %c0_12] : memref<3x8x128xf32, #tpu.memory_space<vmem>>, vector<1x8x128xf32>
    %19 = vector.shape_cast %18 : vector<1x8x128xf32> to vector<8x128xf32>
    %20 = vector.shape_cast %17 : vector<8x128xf32> to vector<1x8x128xf32>
    tpu.vector_store %arg5[%c0_10, %c0_11, %c0_12], %20 {strides = array<i32>} : memref<3x8x128xf32, #tpu.memory_space<vmem>>, vector<1x8x128xf32>,
    %c1 = arith.constant 1 : index
    %c0_13 = arith.constant 0 : index
    %c0_14 = arith.constant 0 : index
    %21 = vector.load %arg5[%c1, %c0_13, %c0_14] : memref<3x8x128xf32, #tpu.memory_space<vmem>>, vector<1x8x128xf32>
    %22 = vector.shape_cast %21 : vector<1x8x128xf32> to vector<8x128xf32>
    %23 = vector.shape_cast %11 : vector<16x128xf32> to vector<2x8x128xf32>
    %cst_15 = arith.constant dense<0.000000e+00> : vector<8x128xf32>
    %24 = vector.multi_reduction <add>, %23, %cst_15 [0] : vector<2x8x128xf32> to vector<8x128xf32>
    %25 = arith.addf %22, %24 : vector<8x128xf32>
    %c1_16 = arith.constant 1 : index
    %c0_17 = arith.constant 0 : index
    %c0_18 = arith.constant 0 : index
    %26 = vector.load %arg5[%c1_16, %c0_17, %c0_18] : memref<3x8x128xf32, #tpu.memory_space<vmem>>, vector<1x8x128xf32>
    %27 = vector.shape_cast %26 : vector<1x8x128xf32> to vector<8x128xf32>
    %28 = vector.shape_cast %25 : vector<8x128xf32> to vector<1x8x128xf32>
    tpu.vector_store %arg5[%c1_16, %c0_17, %c0_18], %28 {strides = array<i32>} : memref<3x8x128xf32, #tpu.memory_space<vmem>>, vector<1x8x128xf32>,
    %c2 = arith.constant 2 : index
    %c0_19 = arith.constant 0 : index
    %c0_20 = arith.constant 0 : index
    %29 = vector.load %arg5[%c2, %c0_19, %c0_20] : memref<3x8x128xf32, #tpu.memory_space<vmem>>, vector<1x8x128xf32>
    %30 = vector.shape_cast %29 : vector<1x8x128xf32> to vector<8x128xf32>
    %31 = vector.shape_cast %4 : vector<16x128xf32> to vector<2x8x128xf32>
    %cst_21 = arith.constant dense<0.000000e+00> : vector<8x128xf32>
    %32 = vector.multi_reduction <add>, %31, %cst_21 [0] : vector<2x8x128xf32> to vector<8x128xf32>
    %33 = arith.addf %30, %32 : vector<8x128xf32>
    %c2_22 = arith.constant 2 : index
    %c0_23 = arith.constant 0 : index
    %c0_24 = arith.constant 0 : index
    %34 = vector.load %arg5[%c2_22, %c0_23, %c0_24] : memref<3x8x128xf32, #tpu.memory_space<vmem>>, vector<1x8x128xf32>
    %35 = vector.shape_cast %34 : vector<1x8x128xf32> to vector<8x128xf32>
    %36 = vector.shape_cast %33 : vector<8x128xf32> to vector<1x8x128xf32>
    tpu.vector_store %arg5[%c2_22, %c0_23, %c0_24], %36 {strides = array<i32>} : memref<3x8x128xf32, #tpu.memory_space<vmem>>, vector<1x8x128xf32>,
    %c0_i32_25 = arith.constant 0 : i32
    %37 = arith.cmpi eq, %arg1, %c0_i32_25 : i32
    %38 = arith.extui %37 : i1 to i32
    %c0_i32_26 = arith.constant 0 : i32
    %39 = arith.cmpi ne, %38, %c0_i32_26 : i32
    scf.if %39 {
      %c0_27 = arith.constant 0 : index
      %c0_28 = arith.constant 0 : index
      %c0_29 = arith.constant 0 : index
      %40 = vector.load %arg5[%c0_27, %c0_28, %c0_29] : memref<3x8x128xf32, #tpu.memory_space<vmem>>, vector<3x8x128xf32>
      %41 = vector.shape_cast %40 : vector<3x8x128xf32> to vector<1x3x8x128xf32>
      %c0_30 = arith.constant 0 : index
      %c0_31 = arith.constant 0 : index
      %c0_32 = arith.constant 0 : index
      %c0_33 = arith.constant 0 : index
      %42 = vector.load %arg4[%c0_30, %c0_31, %c0_32, %c0_33] : memref<1x3x8x128xf32, #tpu.memory_space<vmem>>, vector<1x3x8x128xf32>
      tpu.vector_store %arg4[%c0_30, %c0_31, %c0_32, %c0_33], %41 {strides = array<i32>} : memref<1x3x8x128xf32, #tpu.memory_space<vmem>>, vector<1x3x8x128xf32>,
    } else {
    }
    return
  }
  func.func @transform_0(%arg0: i32, %arg1: i32) -> (i32, i32) {
    %c1_i32 = arith.constant 1 : i32
    %0 = arith.muli %arg0, %c1_i32 : i32
    %1 = arith.addi %0, %arg1 : i32
    %c0_i32 = arith.constant 0 : i32
    %c0_i32_0 = arith.constant 0 : i32
    return %1, %c0_i32 : i32, i32
  }
  func.func @transform_1(%arg0: i32, %arg1: i32) -> (i32, i32) {
    %c1_i32 = arith.constant 1 : i32
    %0 = arith.muli %arg0, %c1_i32 : i32
    %1 = arith.addi %0, %arg1 : i32
    %c0_i32 = arith.constant 0 : i32
    %c0_i32_0 = arith.constant 0 : i32
    return %1, %c0_i32 : i32, i32
  }
  func.func @transform_2(%arg0: i32, %arg1: i32) -> (i32, i32, i32, i32) {
    %c0_i32 = arith.constant 0 : i32
    %c0_i32_0 = arith.constant 0 : i32
    %c0_i32_1 = arith.constant 0 : i32
    %c0_i32_2 = arith.constant 0 : i32
    return %arg0, %c0_i32, %c0_i32_0, %c0_i32_1 : i32, i32, i32, i32
  }
}

</mosaic_0001>

<llo_original>
// kernel: tpu_custom_call.1
$region0: #{tpu_custom_call.1}
  #allocation0 [shape = 'u32[]', space=smem, size = 0x4, offset = 0x4, fixed_abs, tag = 'smem constant byte address 0x4 - core index']
  #allocation1 [shape = 'u32[144,128]{1,0:T(1,128)}', space=vmem, size = 0x12000, scoped, tag = 'internal scratch']
  #allocation2 [shape = 'f32[3,8,128]{2,1,0:T(8,128)}', space=vmem, size = 0x3000, scoped, tag = 'scratch operand']
  %s0 = inlined_call_operand.hbm [shape: f32[16,128], index: 0, kind: input, shape index: {}]
  %s1 = inlined_call_operand.hbm [shape: f32[16,128], index: 1, kind: input, shape index: {}]
  %s2 = inlined_call_operand.hbm [shape: f32[1,3,8,128], index: 2, kind: output, shape index: {}]
  %s3 = sld [smem:[#allocation0]]
  $region34: #{tpu_custom_call.1} parent=0
    _
  %s5 = ssub.s32 1, %s3
  %s6 = scalar_select 0, %s5, %s3
  $region1: #{tpu_custom_call.1} parent=0
    #allocation3 [shape = 'u8[8192]{0}', space=vmem, size = 0x2000, scoped, tag = 'input window, operand 0, single buffered']
    #allocation4 [shape = 's32[1]{0}', space=sflag, size = 0x4, scoped, tag = 'scoped memory for tpu_custom_call.1']
    #allocation5 [shape = 's32[1]{0}', space=sflag, size = 0x4, scoped, tag = 'scoped memory for tpu_custom_call.1']
    #allocation6 [shape = 'u8[8192]{0}', space=vmem, size = 0x2000, scoped, tag = 'input window, operand 1, single buffered']
    #allocation7 [shape = 's32[1]{0}', space=sflag, size = 0x4, scoped, tag = 'scoped memory for tpu_custom_call.1']
    #allocation8 [shape = 'u8[12288]{0}', space=vmem, size = 0x3000, scoped, tag = 'output window, operand 0, single buffered']
    %7 = vsyncpa [#allocation4], 0
    %8 = vsyncpa [#allocation7], 0
    %9 = vsyncpa [#allocation5], 0
    // Predicated region
    $region2: #{tpu_custom_call.1} parent=1 // pred_check
      _
    $region3: #{tpu_custom_call.1} parent=1 // pred_check_branch
      %11 = sbr.rel (0) target = $region5
    $region4: #{tpu_custom_call.1} parent=1 // pred_region
      %s12 = sadd.s32 0, 0
      %s13 = smul.u32 2, %s12
      %s15 = ssub.s32 256, 256
      %16 = vsyncadd [#allocation4], %s15
      %s17 = smul.addr %s13, 128
      %s18 = scalar_lea.hbm %s0, %s17
      %s19 = sshll.u32 [#allocation3], 4
      %s20 = int_to_ptr.vmem [resolvable:$true] %s19
      %25 = dma.hbm_to_vmem [thread:$0]  %s18, 256, %s20, [#allocation4], 128, 128, 8
    $region5: #{tpu_custom_call.1} parent=1 // pred_fallthru
      _
    // Predicated region
    $region6: #{tpu_custom_call.1} parent=1 // pred_check
      _
    $region7: #{tpu_custom_call.1} parent=1 // pred_check_branch
      %27 = sbr.rel (0) target = $region9
    $region8: #{tpu_custom_call.1} parent=1 // pred_region
      %s28 = sadd.s32 0, 0
      %s29 = smul.u32 2, %s28
      %s31 = ssub.s32 256, 256
      %32 = vsyncadd [#allocation7], %s31
      %s33 = smul.addr %s29, 128
      %s34 = scalar_lea.hbm %s1, %s33
      %s35 = sshll.u32 [#allocation6], 4
      %s36 = int_to_ptr.vmem [resolvable:$true] %s35
      %41 = dma.hbm_to_vmem [thread:$0]  %s34, 256, %s36, [#allocation7], 128, 128, 8
    $region9: #{tpu_custom_call.1} parent=1 // pred_fallthru
      _
    // Predicated region
    $region10: #{tpu_custom_call.1} parent=1 // pred_check
      _
    $region11: #{tpu_custom_call.1} parent=1 // pred_check_branch
      %43 = sbr.rel (0) target = $region13
    $region12: #{tpu_custom_call.1} parent=1 // pred_region
      %44 = dma.done [#allocation4], 256
    $region13: #{tpu_custom_call.1} parent=1 // pred_fallthru
      _
    // Predicated region
    $region14: #{tpu_custom_call.1} parent=1 // pred_check
      _
    $region15: #{tpu_custom_call.1} parent=1 // pred_check_branch
      %46 = sbr.rel (0) target = $region17
    $region16: #{tpu_custom_call.1} parent=1 // pred_region
      %47 = dma.done [#allocation7], 256
    $region17: #{tpu_custom_call.1} parent=1 // pred_fallthru
      _
    %s48 = sadd.s32 0, 0
    %s49 = smul.u32 2, %s48
    %s50 = sadd.s32 0, 0
    %s51 = smul.u32 2, %s50
    %p52 = scmp.eq.s32.totalorder 0, 0
    // Predicated region
    $region18: #{tpu_custom_call.1} parent=1 // pred_check
      %p53 = pneg %p52
    $region19: #{tpu_custom_call.1} parent=1 // pred_check_branch
      %55 = sbr.rel (%p53) target = $region21
    $region20: #{tpu_custom_call.1} parent=1 // pred_region
      %56 = vst [vmem:[#allocation2] sm:$0xff] 0.0
      %57 = vst [vmem:[#allocation2 + $0x8] sm:$0xff] 0.0
      %58 = vst [vmem:[#allocation2 + $0x10] sm:$0xff] 0.0
    $region21: #{tpu_custom_call.1} parent=1 // pred_fallthru
      _
    %v59 = vld [vmem:[#allocation3] sm:$0xff]
    %v60 = vld [vmem:[#allocation3 + $0x8] sm:$0xff]
    %v61 = vld [vmem:[#allocation6] sm:$0xff]
    %v62 = vld [vmem:[#allocation6 + $0x8] sm:$0xff]
    %v63 = vmul.f32 %v59, 0.5
    %v64 = vmul.f32 %v60, 0.5
    %v65 = vtanh.pop %v63
    %v66 = vtanh.pop %v64
    %v67 = vmul.f32 %v65, 0.5
    %v68 = vmul.f32 %v66, 0.5
    %v69 = vadd.f32 %v67, 0.5
    %v70 = vadd.f32 %v68, 0.5
    %v71 = vld [vmem:[#allocation2] sm:$0xff]
    %v72 = vmul.f32 %v61, %v69
    %v73 = vmul.f32 %v62, %v70
    %v74 = vadd.f32 %v72, %v73
    %v75 = vadd.f32 %v71, %v74
    %76 = vst [vmem:[#allocation2] sm:$0xff] %v75
    %s77 = scalar_lea.vmem [#allocation2], 8
    %v78 = vld [vmem:[%s77] sm:$0xff]
    %v79 = vadd.f32 %v69, %v70
    %v80 = vadd.f32 %v78, %v79
    %81 = vst [vmem:[%s77] sm:$0xff] %v80
    %s82 = scalar_lea.vmem [#allocation2], 16
    %v83 = vld [vmem:[%s82] sm:$0xff]
    %v84 = vadd.f32 %v61, %v62
    %v85 = vadd.f32 %v83, %v84
    %86 = vst [vmem:[%s82] sm:$0xff] %v85
    // Predicated region
    $region22: #{tpu_custom_call.1} parent=1 // pred_check
      %p87 = pneg %p52
    $region23: #{tpu_custom_call.1} parent=1 // pred_check_branch
      %89 = sbr.rel (%p87) target = $region25
    $region24: #{tpu_custom_call.1} parent=1 // pred_region
      %v90 = vld [vmem:[#allocation2] sm:$0xff]
      %v91 = vld [vmem:[#allocation2 + $0x8] sm:$0xff]
      %v92 = vld [vmem:[#allocation2 + $0x10] sm:$0xff]
      %93 = vst [vmem:[#allocation8] sm:$0xff] %v90
      %94 = vst [vmem:[#allocation8 + $0x8] sm:$0xff] %v91
      %95 = vst [vmem:[#allocation8 + $0x10] sm:$0xff] %v92
    $region25: #{tpu_custom_call.1} parent=1 // pred_fallthru
      _
    // Predicated region
    $region26: #{tpu_custom_call.1} parent=1 // pred_check
      _
    $region27: #{tpu_custom_call.1} parent=1 // pred_check_branch
      %97 = sbr.rel (0) target = $region29
    $region28: #{tpu_custom_call.1} parent=1 // pred_region
      %s99 = ssub.s32 384, 384
      %100 = vsyncadd [#allocation5], %s99
      %s101 = sshll.u32 [#allocation8], 4
      %s102 = int_to_ptr.vmem [resolvable:$true] %s101
      %107 = dma.vmem_to_hbm [thread:$0]  %s102, 384, %s2, [#allocation5], 128, 128, 8
    $region29: #{tpu_custom_call.1} parent=1 // pred_fallthru
      _
    // Predicated region
    $region30: #{tpu_custom_call.1} parent=1 // pred_check
      _
    $region31: #{tpu_custom_call.1} parent=1 // pred_check_branch
      %109 = sbr.rel (0) target = $region33
    $region32: #{tpu_custom_call.1} parent=1 // pred_region
      %110 = dma.done [#allocation5], 384
    $region33: #{tpu_custom_call.1} parent=1 // pred_fallthru
      _
    %111 = vsyncpa [#allocation4], 1
    %112 = vsyncpa [#allocation7], 1
    %113 = vsyncpa [#allocation5], 1

</llo_original>
